<compile_context>
chip_gen: v6e
topology: v6e:2x2x1
jax: 0.10.0
libtpu: 0.0.40
codegen_flags: <defaults>
</compile_context>

<pallas_src>
import jax
import jax.numpy as jnp
from jax.experimental import pallas as pl
from jax.experimental.pallas import tpu as pltpu


def _mlp_kernel(x_ref, w1_ref, b1_ref, w2_ref, b2_ref, o_ref):
    # Linear 1 (bf16 x bf16 -> f32 acc) + bias + ReLU (f32 epilogue).
    h = jnp.dot(x_ref[...], w1_ref[...], preferred_element_type=jnp.float32)
    h = jnp.maximum(h + b1_ref[...], 0.0)          # (tm, H) + (1, H) broadcast
    # Linear 2 (recast activation to bf16 for the MXU) + bias + ReLU.
    y = jnp.dot(h.astype(w2_ref.dtype), w2_ref[...],
                preferred_element_type=jnp.float32)
    y = jnp.maximum(y + b2_ref[...], 0.0)
    o_ref[...] = y.astype(o_ref.dtype)


def _round_up(n, m):
    return ((n + m - 1) // m) * m


def high_level_encoder(x, w1, b1, w2, b2, *, tm=256, compute_dtype=jnp.bfloat16):
    """Fused MLP forward.

    x : (B, D) float32          (D = input_dim)
    w1: (D, H), b1: (H,)        (H = hidden_dim)   -- (in, out) layout, i.e.
    w2: (H, H), b2: (H,)           PyTorch weight transposed.
    Returns (B, H) float32.
    """
    B, D = x.shape
    H = w1.shape[1]
    out_dtype = x.dtype

    # Batch tile: big enough to fill the MXU M rows (128 v5e / 256 v6e, v7x)
    # and amortize grid-step overhead, clamped for tiny batches.  Multiple of
    # 16 keeps bf16 sublane packing + the (8,128) block rule happy.
    tm_eff = min(tm, _round_up(B, 16))
    Bp = _round_up(B, tm_eff)
    grid = (Bp // tm_eff,)

    # Cast matmul operands to bf16 (native MXU input); biases stay f32.
    xc = x.astype(compute_dtype)
    if Bp != B:
        xc = jnp.pad(xc, ((0, Bp - B), (0, 0)))
    w1c = w1.astype(compute_dtype)
    w2c = w2.astype(compute_dtype)
    b1f = b1.reshape(1, H).astype(jnp.float32)
    b2f = b2.reshape(1, H).astype(jnp.float32)

    # Advisory cost hint for the XLA scheduler.
    bytes_accessed = (Bp * D * 2          # x (bf16)
                      + D * H * 2         # W1 (bf16)
                      + H * H * 2         # W2 (bf16)
                      + 2 * H * 4         # biases (f32)
                      + Bp * H * 4)       # out (f32)
    cost = pl.CostEstimate(flops=2 * Bp * H * (D + H),
                           transcendentals=0,
                           bytes_accessed=bytes_accessed)

    # Weights/biases never change across the grid -> single-buffer them.
    resident = pl.Buffered(buffer_count=1)

    out = pl.pallas_call(
        _mlp_kernel,
        out_shape=jax.ShapeDtypeStruct((Bp, H), out_dtype),
        grid_spec=pltpu.PrefetchScalarGridSpec(
            num_scalar_prefetch=0,
            grid=grid,
            in_specs=[
                pl.BlockSpec((tm_eff, D), lambda i: (i, 0)),                    # x tile (streamed)
                pl.BlockSpec((D, H), lambda i: (0, 0), pipeline_mode=resident),  # W1 (resident)
                pl.BlockSpec((1, H), lambda i: (0, 0), pipeline_mode=resident),  # b1
                pl.BlockSpec((H, H), lambda i: (0, 0), pipeline_mode=resident),  # W2 (resident)
                pl.BlockSpec((1, H), lambda i: (0, 0), pipeline_mode=resident),  # b2
            ],
            out_specs=pl.BlockSpec((tm_eff, H), lambda i: (i, 0)),
        ),
        compiler_params=pltpu.CompilerParams(
            dimension_semantics=("parallel",),        # megacore split on v7x when grid >= 2
            vmem_limit_bytes=32 * 1024 * 1024,        # explicit; fits v5e/v6e/v7x budgets
        ),
        cost_estimate=cost,
    )(xc, w1c, b1f, w2c, b2f)

    return out[:B] if Bp != B else out


# ----------------------------- references ---------------------------------

def _reference_f32(x, w1, b1, w2, b2):
    h = jnp.maximum(x @ w1 + b1, 0.0)
    return jnp.maximum(h @ w2 + b2, 0.0)


def _reference_bf16(x, w1, b1, w2, b2):
    h = jnp.dot(x.astype(jnp.bfloat16), w1.astype(jnp.bfloat16),
                preferred_element_type=jnp.float32) + b1
    h = jnp.maximum(h, 0.0)
    y = jnp.dot(h.astype(jnp.bfloat16), w2.astype(jnp.bfloat16),
                preferred_element_type=jnp.float32) + b2
    return jnp.maximum(y, 0.0)


if __name__ == "__main__":
    input_dim = 256    # module defaults (already lane-aligned)
    hidden_dim = 128
    batch = 200        # deliberately NOT a multiple of the tile: exercises padding

    key = jax.random.PRNGKey(0)
    kx, k1, kb1, k2, kb2 = jax.random.split(key, 5)

    x = jax.random.normal(kx, (batch, input_dim), dtype=jnp.float32)

    # PyTorch Linear stores (out, in); we keep the transposed (in, out) layout.
    lim1 = 1.0 / (input_dim ** 0.5)
    lim2 = 1.0 / (hidden_dim ** 0.5)
    w1 = jax.random.uniform(k1, (input_dim, hidden_dim), jnp.float32, -lim1, lim1)
    b1 = jax.random.uniform(kb1, (hidden_dim,), jnp.float32, -lim1, lim1)
    w2 = jax.random.uniform(k2, (hidden_dim, hidden_dim), jnp.float32, -lim2, lim2)
    b2 = jax.random.uniform(kb2, (hidden_dim,), jnp.float32, -lim2, lim2)

    # Default tile (tm=256 -> clamped to 208 here, single grid step).
    out = high_level_encoder(x, w1, b1, w2, b2)
    # Smaller tile -> 2 grid steps: exercises padding + multi-step (megacore) path.
    out2 = high_level_encoder(x, w1, b1, w2, b2, tm=128)
    jax.block_until_ready((out, out2))

    assert out.shape == (batch, hidden_dim)
    assert out2.shape == (batch, hidden_dim)

    ref_bf16 = _reference_bf16(x, w1, b1, w2, b2)   # same bf16-in / f32-acc recipe
    ref_f32 = _reference_f32(x, w1, b1, w2, b2)     # semantic (full f32) reference

    assert jnp.allclose(out, ref_bf16, atol=2e-3, rtol=2e-3), "mismatch vs bf16 reference"
    assert jnp.allclose(out, ref_f32, atol=5e-2, rtol=5e-2), "mismatch vs f32 reference"
    assert jnp.allclose(out2, out, atol=1e-5, rtol=1e-5), "tile size changed the result"

    print("KERNEL_OK")
</pallas_src>

<mosaic_0001>
module attributes {stable_mosaic.version = 11 : i64} {
  func.func @_mlp_kernel(%arg0: i32, %arg1: memref<208x256xbf16, #tpu.memory_space<vmem>>, %arg2: memref<256x128xbf16, #tpu.memory_space<vmem>>, %arg3: memref<1x128xf32, #tpu.memory_space<vmem>>, %arg4: memref<128x128xbf16, #tpu.memory_space<vmem>>, %arg5: memref<1x128xf32, #tpu.memory_space<vmem>>, %arg6: memref<208x128xf32, #tpu.memory_space<vmem>>) attributes {dimension_semantics = [#tpu.dimension_semantics<parallel>], iteration_bounds = array<i64: 1>, scalar_prefetch = 0 : i64, scratch_operands = 0 : i64, tpu.core_type = #tpu.core_type<tc>, window_params = [{transform_indices = @transform_0, window_bounds = array<i64: 208, 256>}, {pipeline_mode = #tpu.pipeline_mode<synchronous>, transform_indices = @transform_1, window_bounds = array<i64: 256, 128>}, {pipeline_mode = #tpu.pipeline_mode<synchronous>, transform_indices = @transform_2, window_bounds = array<i64: 1, 128>}, {pipeline_mode = #tpu.pipeline_mode<synchronous>, transform_indices = @transform_3, window_bounds = array<i64: 128, 128>}, {pipeline_mode = #tpu.pipeline_mode<synchronous>, transform_indices = @transform_4, window_bounds = array<i64: 1, 128>}, {transform_indices = @transform_5, window_bounds = array<i64: 208, 128>}]} {
    %c0 = arith.constant 0 : index
    %c0_0 = arith.constant 0 : index
    %0 = vector.load %arg1[%c0, %c0_0] : memref<208x256xbf16, #tpu.memory_space<vmem>>, vector<208x256xbf16>
    %c0_1 = arith.constant 0 : index
    %c0_2 = arith.constant 0 : index
    %1 = vector.load %arg2[%c0_1, %c0_2] : memref<256x128xbf16, #tpu.memory_space<vmem>>, vector<256x128xbf16>
    %cst = arith.constant dense<0.000000e+00> : vector<208x128xf32>
    %2 = tpu.matmul %0, %1, %cst {dimension_numbers = #tpu.dot_dimension_numbers<[1], [0], [0], [1], [0, 0, 1, 1], [], []>} : vector<208x256xbf16>, vector<256x128xbf16>, vector<208x128xf32> -> vector<208x128xf32>
    %c0_3 = arith.constant 0 : index
    %c0_4 = arith.constant 0 : index
    %3 = vector.load %arg3[%c0_3, %c0_4] : memref<1x128xf32, #tpu.memory_space<vmem>>, vector<1x128xf32>
    %4 = vector.broadcast %3 : vector<1x128xf32> to vector<208x128xf32>
    %5 = arith.addf %2, %4 : vector<208x128xf32>
    %cst_5 = arith.constant 0.000000e+00 : f32
    %6 = vector.broadcast %cst_5 : f32 to vector<208x128xf32>
    %7 = arith.maximumf %5, %6 : vector<208x128xf32>
    %8 = arith.truncf %7 : vector<208x128xf32> to vector<208x128xbf16>
    %c0_6 = arith.constant 0 : index
    %c0_7 = arith.constant 0 : index
    %9 = vector.load %arg4[%c0_6, %c0_7] : memref<128x128xbf16, #tpu.memory_space<vmem>>, vector<128x128xbf16>
    %cst_8 = arith.constant dense<0.000000e+00> : vector<208x128xf32>
    %10 = tpu.matmul %8, %9, %cst_8 {dimension_numbers = #tpu.dot_dimension_numbers<[1], [0], [0], [1], [0, 0, 1, 1], [], []>} : vector<208x128xbf16>, vector<128x128xbf16>, vector<208x128xf32> -> vector<208x128xf32>
    %c0_9 = arith.constant 0 : index
    %c0_10 = arith.constant 0 : index
    %11 = vector.load %arg5[%c0_9, %c0_10] : memref<1x128xf32, #tpu.memory_space<vmem>>, vector<1x128xf32>
    %12 = vector.broadcast %11 : vector<1x128xf32> to vector<208x128xf32>
    %13 = arith.addf %10, %12 : vector<208x128xf32>
    %cst_11 = arith.constant 0.000000e+00 : f32
    %14 = vector.broadcast %cst_11 : f32 to vector<208x128xf32>
    %15 = arith.maximumf %13, %14 : vector<208x128xf32>
    %c0_12 = arith.constant 0 : index
    %c0_13 = arith.constant 0 : index
    %16 = vector.load %arg6[%c0_12, %c0_13] : memref<208x128xf32, #tpu.memory_space<vmem>>, vector<208x128xf32>
    tpu.vector_store %arg6[%c0_12, %c0_13], %15 {strides = array<i32>} : memref<208x128xf32, #tpu.memory_space<vmem>>, vector<208x128xf32>,
    return
  }
  func.func @transform_0(%arg0: i32) -> (i32, i32) {
    %c0_i32 = arith.constant 0 : i32
    %c0_i32_0 = arith.constant 0 : i32
    return %arg0, %c0_i32 : i32, i32
  }
  func.func @transform_1(%arg0: i32) -> (i32, i32) {
    %c0_i32 = arith.constant 0 : i32
    %c0_i32_0 = arith.constant 0 : i32
    %c0_i32_1 = arith.constant 0 : i32
    return %c0_i32, %c0_i32_0 : i32, i32
  }
  func.func @transform_2(%arg0: i32) -> (i32, i32) {
    %c0_i32 = arith.constant 0 : i32
    %c0_i32_0 = arith.constant 0 : i32
    %c0_i32_1 = arith.constant 0 : i32
    return %c0_i32, %c0_i32_0 : i32, i32
  }
  func.func @transform_3(%arg0: i32) -> (i32, i32) {
    %c0_i32 = arith.constant 0 : i32
    %c0_i32_0 = arith.constant 0 : i32
    %c0_i32_1 = arith.constant 0 : i32
    return %c0_i32, %c0_i32_0 : i32, i32
  }
  func.func @transform_4(%arg0: i32) -> (i32, i32) {
    %c0_i32 = arith.constant 0 : i32
    %c0_i32_0 = arith.constant 0 : i32
    %c0_i32_1 = arith.constant 0 : i32
    return %c0_i32, %c0_i32_0 : i32, i32
  }
  func.func @transform_5(%arg0: i32) -> (i32, i32) {
    %c0_i32 = arith.constant 0 : i32
    %c0_i32_0 = arith.constant 0 : i32
    return %arg0, %c0_i32 : i32, i32
  }
}

</mosaic_0001>

<llo_original>
// kernel: tpu_custom_call.1
$region0: #{tpu_custom_call.1}
  #allocation0 [shape = 'u32[]', space=smem, size = 0x4, offset = 0x4, fixed_abs, tag = 'smem constant byte address 0x4 - core index']
  #allocation1 [shape = 'u32[144,128]{1,0:T(1,128)}', space=vmem, size = 0x12000, scoped, tag = 'internal scratch']
  %s0 = inlined_call_operand.hbm [shape: bf16[208,256], index: 0, kind: input, shape index: {}]
  %s1 = inlined_call_operand.hbm [shape: bf16[256,128], index: 1, kind: input, shape index: {}]
  %s2 = inlined_call_operand.vmem [shape: f32[1,128], index: 2, kind: input, shape index: {}]
  %s3 = inlined_call_operand.hbm [shape: bf16[128,128], index: 3, kind: input, shape index: {}]
  %s4 = inlined_call_operand.vmem [shape: f32[1,128], index: 4, kind: input, shape index: {}]
  %s5 = inlined_call_operand.hbm [shape: f32[208,128], index: 5, kind: output, shape index: {}]
  %s6 = sld [smem:[#allocation0]]
  $region42: #{tpu_custom_call.1} parent=0
    _
  %s8 = ssub.s32 1, %s6
  %s9 = scalar_select 0, %s8, %s6
  $region1: #{tpu_custom_call.1} parent=0
    #allocation2 [shape = 'u8[106496]{0}', space=vmem, size = 0x1a000, scoped, tag = 'input window, operand 0, single buffered']
    #allocation3 [shape = 's32[1]{0}', space=sflag, size = 0x4, scoped, tag = 'scoped memory for tpu_custom_call.1']
    #allocation4 [shape = 's32[1]{0}', space=sflag, size = 0x4, scoped, tag = 'scoped memory for tpu_custom_call.1']
    #allocation5 [shape = 'u8[65536]{0}', space=vmem, size = 0x10000, scoped, tag = 'input window, operand 1, single buffered']
    #allocation6 [shape = 's32[1]{0}', space=sflag, size = 0x4, scoped, tag = 'scoped memory for tpu_custom_call.1']
    #allocation7 [shape = 'u8[32768]{0}', space=vmem, size = 0x8000, scoped, tag = 'input window, operand 3, single buffered']
    #allocation8 [shape = 'u8[106496]{0}', space=vmem, size = 0x1a000, scoped, tag = 'output window, operand 0, single buffered']
    %10 = vsyncpa [#allocation3], 0
    %11 = vsyncpa [#allocation6], 0
    %12 = vsyncpa [#allocation4], 0
    // Predicated region
    $region2: #{tpu_custom_call.1} parent=1 // pred_check
      _
    $region3: #{tpu_custom_call.1} parent=1 // pred_check_branch
      %14 = sbr.rel (0) target = $region5
    $region4: #{tpu_custom_call.1} parent=1 // pred_region
      %s16 = ssub.s32 3328, 3328
      %17 = vsyncadd [#allocation3], %s16
      %s18 = sshll.u32 [#allocation2], 4
      %s19 = int_to_ptr.vmem [resolvable:$true] %s18
      %24 = dma.hbm_to_vmem [thread:$0]  %s0, 3328, %s19, [#allocation3], 128, 128, 8
    $region5: #{tpu_custom_call.1} parent=1 // pred_fallthru
      _
    // Predicated region
    $region6: #{tpu_custom_call.1} parent=1 // pred_check
      _
    $region7: #{tpu_custom_call.1} parent=1 // pred_check_branch
      %26 = sbr.rel (0) target = $region9
    $region8: #{tpu_custom_call.1} parent=1 // pred_region
      %s28 = ssub.s32 2048, 2048
      %29 = vsyncadd [#allocation6], %s28
      %s30 = sshll.u32 [#allocation5], 4
      %s31 = int_to_ptr.vmem [resolvable:$true] %s30
      %36 = dma.hbm_to_vmem [thread:$0]  %s1, 2048, %s31, [#allocation6], 64, 64, 4
    $region9: #{tpu_custom_call.1} parent=1 // pred_fallthru
      _
    // Predicated region
    $region10: #{tpu_custom_call.1} parent=1 // pred_check
      _
    $region11: #{tpu_custom_call.1} parent=1 // pred_check_branch
      %38 = sbr.rel (0) target = $region13
    $region12: #{tpu_custom_call.1} parent=1 // pred_region
      _
    $region13: #{tpu_custom_call.1} parent=1 // pred_fallthru
      _
    // Predicated region
    $region14: #{tpu_custom_call.1} parent=1 // pred_check
      _
    $region15: #{tpu_custom_call.1} parent=1 // pred_check_branch
      %40 = sbr.rel (0) target = $region17
    $region16: #{tpu_custom_call.1} parent=1 // pred_region
      %s42 = ssub.s32 1024, 1024
      %43 = vsyncadd [#allocation6], %s42
      %s44 = sshll.u32 [#allocation7], 4
      %s45 = int_to_ptr.vmem [resolvable:$true] %s44
      %50 = dma.hbm_to_vmem [thread:$0]  %s3, 1024, %s45, [#allocation6], 64, 64, 4
    $region17: #{tpu_custom_call.1} parent=1 // pred_fallthru
      _
    // Predicated region
    $region18: #{tpu_custom_call.1} parent=1 // pred_check
      _
    $region19: #{tpu_custom_call.1} parent=1 // pred_check_branch
      %52 = sbr.rel (0) target = $region21
    $region20: #{tpu_custom_call.1} parent=1 // pred_region
      _
    $region21: #{tpu_custom_call.1} parent=1 // pred_fallthru
      _
    // Predicated region
    $region22: #{tpu_custom_call.1} parent=1 // pred_check
      _
    $region23: #{tpu_custom_call.1} parent=1 // pred_check_branch
      %54 = sbr.rel (0) target = $region25
    $region24: #{tpu_custom_call.1} parent=1 // pred_region
      %55 = dma.done [#allocation3], 3328
    $region25: #{tpu_custom_call.1} parent=1 // pred_fallthru
      _
    // Predicated region
    $region26: #{tpu_custom_call.1} parent=1 // pred_check
      _
    $region27: #{tpu_custom_call.1} parent=1 // pred_check_branch
      %57 = sbr.rel (0) target = $region29
    $region28: #{tpu_custom_call.1} parent=1 // pred_region
      %58 = dma.done [#allocation6], 2048
    $region29: #{tpu_custom_call.1} parent=1 // pred_fallthru
      _
    // Predicated region
    $region30: #{tpu_custom_call.1} parent=1 // pred_check
      _
    $region31: #{tpu_custom_call.1} parent=1 // pred_check_branch
      %60 = sbr.rel (0) target = $region33
    $region32: #{tpu_custom_call.1} parent=1 // pred_region
      %61 = dma.done [#allocation6], 1024
    $region33: #{tpu_custom_call.1} parent=1 // pred_fallthru
      _
    %v63 = vld [vmem:[#allocation2] sm:$0xff]
    %v64 = vld [vmem:[#allocation2 + $0x8] sm:$0xff]
    %v65 = vld [vmem:[#allocation2 + $0x10] sm:$0xff]
    %v66 = vld [vmem:[#allocation2 + $0x18] sm:$0xff]
    %v67 = vld [vmem:[#allocation2 + $0x20] sm:$0xff]
    %v68 = vld [vmem:[#allocation2 + $0x28] sm:$0xff]
    %v69 = vld [vmem:[#allocation2 + $0x30] sm:$0xff]
    %v70 = vld [vmem:[#allocation2 + $0x38] sm:$0xff]
    %v71 = vld [vmem:[#allocation2 + $0x40] sm:$0xff]
    %v72 = vld [vmem:[#allocation2 + $0x48] sm:$0xff]
    %v73 = vld [vmem:[#allocation2 + $0x50] sm:$0xff]
    %v74 = vld [vmem:[#allocation2 + $0x58] sm:$0xff]
    %v75 = vld [vmem:[#allocation2 + $0x60] sm:$0xff]
    %v76 = vld [vmem:[#allocation2 + $0x68] sm:$0xff]
    %v77 = vld [vmem:[#allocation2 + $0x70] sm:$0xff]
    %v78 = vld [vmem:[#allocation2 + $0x78] sm:$0xff]
    %v79 = vld [vmem:[#allocation2 + $0x80] sm:$0xff]
    %v80 = vld [vmem:[#allocation2 + $0x88] sm:$0xff]
    %v81 = vld [vmem:[#allocation2 + $0x90] sm:$0xff]
    %v82 = vld [vmem:[#allocation2 + $0x98] sm:$0xff]
    %v83 = vld [vmem:[#allocation2 + $0xa0] sm:$0xff]
    %v84 = vld [vmem:[#allocation2 + $0xa8] sm:$0xff]
    %v85 = vld [vmem:[#allocation2 + $0xb0] sm:$0xff]
    %v86 = vld [vmem:[#allocation2 + $0xb8] sm:$0xff]
    %v87 = vld [vmem:[#allocation2 + $0xc0] sm:$0xff]
    %v88 = vld [vmem:[#allocation2 + $0xc8] sm:$0xff]
    %v89 = vld [vmem:[#allocation5] sm:$0xf]
    %v90 = vld [vmem:[#allocation5 + $0x4] sm:$0xf]
    %v91 = vld [vmem:[#allocation5 + $0x8] sm:$0xf]
    %v92 = vld [vmem:[#allocation5 + $0xc] sm:$0xf]
    %v93 = vld [vmem:[#allocation5 + $0x10] sm:$0xf]
    %v94 = vld [vmem:[#allocation5 + $0x14] sm:$0xf]
    %v95 = vld [vmem:[#allocation5 + $0x18] sm:$0xf]
    %v96 = vld [vmem:[#allocation5 + $0x1c] sm:$0xf]
    %v97 = vld [vmem:[#allocation5 + $0x20] sm:$0xf]
    %v98 = vld [vmem:[#allocation5 + $0x24] sm:$0xf]
    %v99 = vld [vmem:[#allocation5 + $0x28] sm:$0xf]
    %v100 = vld [vmem:[#allocation5 + $0x2c] sm:$0xf]
    %v101 = vld [vmem:[#allocation5 + $0x30] sm:$0xf]
    %v102 = vld [vmem:[#allocation5 + $0x34] sm:$0xf]
    %v103 = vld [vmem:[#allocation5 + $0x38] sm:$0xf]
    %v104 = vld [vmem:[#allocation5 + $0x3c] sm:$0xf]
    %v105 = vld [vmem:[#allocation5 + $0x40] sm:$0xf]
    %v106 = vld [vmem:[#allocation5 + $0x44] sm:$0xf]
    %v107 = vld [vmem:[#allocation5 + $0x48] sm:$0xf]
    %v108 = vld [vmem:[#allocation5 + $0x4c] sm:$0xf]
    %v109 = vld [vmem:[#allocation5 + $0x50] sm:$0xf]
    %v110 = vld [vmem:[#allocation5 + $0x54] sm:$0xf]
    %v111 = vld [vmem:[#allocation5 + $0x58] sm:$0xf]
    %v112 = vld [vmem:[#allocation5 + $0x5c] sm:$0xf]
    %v113 = vld [vmem:[#allocation5 + $0x60] sm:$0xf]
    %v114 = vld [vmem:[#allocation5 + $0x64] sm:$0xf]
    %v115 = vld [vmem:[#allocation5 + $0x68] sm:$0xf]
    %v116 = vld [vmem:[#allocation5 + $0x6c] sm:$0xf]
    %v117 = vld [vmem:[#allocation5 + $0x70] sm:$0xf]
    %v118 = vld [vmem:[#allocation5 + $0x74] sm:$0xf]
    %v119 = vld [vmem:[#allocation5 + $0x78] sm:$0xf]
    %v120 = vld [vmem:[#allocation5 + $0x7c] sm:$0xf]
    %v121 = vld [vmem:[%s2] sm:$0x1]
    %v123 = vlaneseq
    %v124 = vshrl.u32 %v123, 7
    %v125 = vsub.s32 0, %v124
    %v126 = vrot.slane %v121, %v125
    %v154 = vunpack.c.l.b16 %v63
    %v155 = vunpack.c.h.b16 %v63
    %v156 = vunpack.c.l.b16 %v64
    %v157 = vunpack.c.h.b16 %v64
    %v158 = vunpack.c.l.b16 %v65
    %v159 = vunpack.c.h.b16 %v65
    %v160 = vunpack.c.l.b16 %v66
    %v161 = vunpack.c.h.b16 %v66
    %v162 = vunpack.c.l.b16 %v67
    %v163 = vunpack.c.h.b16 %v67
    %v164 = vunpack.c.l.b16 %v68
    %v165 = vunpack.c.h.b16 %v68
    %v166 = vunpack.c.l.b16 %v69
    %v167 = vunpack.c.h.b16 %v69
    %v168 = vunpack.c.l.b16 %v70
    %v169 = vunpack.c.h.b16 %v70
    %v170 = vunpack.c.l.b16 %v71
    %v171 = vunpack.c.h.b16 %v71
    %v172 = vunpack.c.l.b16 %v72
    %v173 = vunpack.c.h.b16 %v72
    %v174 = vunpack.c.l.b16 %v73
    %v175 = vunpack.c.h.b16 %v73
    %v176 = vunpack.c.l.b16 %v74
    %v177 = vunpack.c.h.b16 %v74
    %v178 = vunpack.c.l.b16 %v75
    %v179 = vunpack.c.h.b16 %v75
    %v180 = vunpack.c.l.b16 %v76
    %v181 = vunpack.c.h.b16 %v76
    %v182 = vunpack.c.l.b16 %v77
    %v183 = vunpack.c.h.b16 %v77
    %v184 = vunpack.c.l.b16 %v78
    %v185 = vunpack.c.h.b16 %v78
    %v186 = vunpack.c.l.b16 %v79
    %v187 = vunpack.c.h.b16 %v79
    %v188 = vunpack.c.l.b16 %v80
    %v189 = vunpack.c.h.b16 %v80
    %v190 = vunpack.c.l.b16 %v81
    %v191 = vunpack.c.h.b16 %v81
    %v192 = vunpack.c.l.b16 %v82
    %v193 = vunpack.c.h.b16 %v82
    %v194 = vunpack.c.l.b16 %v83
    %v195 = vunpack.c.h.b16 %v83
    %v196 = vunpack.c.l.b16 %v84
    %v197 = vunpack.c.h.b16 %v84
    %v198 = vunpack.c.l.b16 %v85
    %v199 = vunpack.c.h.b16 %v85
    %v200 = vunpack.c.l.b16 %v86
    %v201 = vunpack.c.h.b16 %v86
    %v202 = vunpack.c.l.b16 %v87
    %v203 = vunpack.c.h.b16 %v87
    %v204 = vunpack.c.l.b16 %v88
    %v205 = vunpack.c.h.b16 %v88
    %v206 = vpack.c.b16 %v156, %v154
    %v207 = vpack.c.b16 %v157, %v155
    %v208 = vpack.c.b16 %v160, %v158
    %v209 = vpack.c.b16 %v161, %v159
    %v210 = vpack.c.b16 %v164, %v162
    %v211 = vpack.c.b16 %v165, %v163
    %v212 = vpack.c.b16 %v168, %v166
    %v213 = vpack.c.b16 %v169, %v167
    %v214 = vpack.c.b16 %v172, %v170
    %v215 = vpack.c.b16 %v173, %v171
    %v216 = vpack.c.b16 %v176, %v174
    %v217 = vpack.c.b16 %v177, %v175
    %v218 = vpack.c.b16 %v180, %v178
    %v219 = vpack.c.b16 %v181, %v179
    %v220 = vpack.c.b16 %v184, %v182
    %v221 = vpack.c.b16 %v185, %v183
    %v222 = vpack.c.b16 %v188, %v186
    %v223 = vpack.c.b16 %v189, %v187
    %v224 = vpack.c.b16 %v192, %v190
    %v225 = vpack.c.b16 %v193, %v191
    %v226 = vpack.c.b16 %v196, %v194
    %v227 = vpack.c.b16 %v197, %v195
    %v228 = vpack.c.b16 %v200, %v198
    %v229 = vpack.c.b16 %v201, %v199
    %v230 = vpack.c.b16 %v204, %v202
    %v231 = vpack.c.b16 %v205, %v203
    %v290 = vunpack.c.l.b16 %v89
    %v291 = vunpack.c.l.b16 %v90
    %v292 = vunpack.c.l.b16 %v91
    %v293 = vunpack.c.l.b16 %v92
    %v294 = vunpack.c.l.b16 %v93
    %v295 = vunpack.c.l.b16 %v94
    %v296 = vunpack.c.l.b16 %v95
    %v297 = vunpack.c.l.b16 %v96
    %v298 = vunpack.c.l.b16 %v97
    %v299 = vunpack.c.l.b16 %v98
    %v300 = vunpack.c.l.b16 %v99
    %v301 = vunpack.c.l.b16 %v100
    %v302 = vunpack.c.l.b16 %v101
    %v303 = vunpack.c.l.b16 %v102
    %v304 = vunpack.c.l.b16 %v103
    %v305 = vunpack.c.l.b16 %v104
    %v306 = vunpack.c.l.b16 %v105
    %v307 = vunpack.c.l.b16 %v106
    %v308 = vunpack.c.l.b16 %v107
    %v309 = vunpack.c.l.b16 %v108
    %v310 = vunpack.c.l.b16 %v109
    %v311 = vunpack.c.l.b16 %v110
    %v312 = vunpack.c.l.b16 %v111
    %v313 = vunpack.c.l.b16 %v112
    %v314 = vunpack.c.l.b16 %v113
    %v315 = vunpack.c.l.b16 %v114
    %v316 = vunpack.c.l.b16 %v115
    %v317 = vunpack.c.l.b16 %v116
    %v318 = vunpack.c.l.b16 %v117
    %v319 = vunpack.c.l.b16 %v118
    %v320 = vunpack.c.l.b16 %v119
    %v321 = vunpack.c.l.b16 %v120
    %v322 = vpack.c.b16 %v291, %v290
    %v323 = vpack.c.b16 %v293, %v292
    %v324 = vpack.c.b16 %v295, %v294
    %v325 = vpack.c.b16 %v297, %v296
    %v326 = vpack.c.b16 %v299, %v298
    %v327 = vpack.c.b16 %v301, %v300
    %v328 = vpack.c.b16 %v303, %v302
    %v329 = vpack.c.b16 %v305, %v304
    %v330 = vpack.c.b16 %v307, %v306
    %v331 = vpack.c.b16 %v309, %v308
    %v332 = vpack.c.b16 %v311, %v310
    %v333 = vpack.c.b16 %v313, %v312
    %v334 = vpack.c.b16 %v315, %v314
    %v335 = vpack.c.b16 %v317, %v316
    %v336 = vpack.c.b16 %v319, %v318
    %v337 = vpack.c.b16 %v321, %v320
    %354 = vmatprep.subr.bf16.mxu0 0
    %355 = vmatpush1.bf16.msra.mxu0 %v329
    %356 = vmatprep.subr.bf16.mxu0 0
    %357 = vmatpush1.bf16.msra.mxu0 %v328
    %358 = vmatprep.subr.bf16.mxu0 0
    %359 = vmatpush1.bf16.msra.mxu0 %v327
    %360 = vmatprep.subr.bf16.mxu0 0
    %361 = vmatpush1.bf16.msra.mxu0 %v326
    %362 = vmatprep.subr.bf16.mxu0 0
    %363 = vmatpush1.bf16.msra.mxu0 %v325
    %364 = vmatprep.subr.bf16.mxu0 0
    %365 = vmatpush1.bf16.msra.mxu0 %v324
    %366 = vmatprep.subr.bf16.mxu0 0
    %367 = vmatpush1.bf16.msra.mxu0 %v323
    %368 = vmatprep.subr.bf16.mxu0 0
    %369 = vmatpush1.bf16.msra.mxu0 %v322
    %370 = vmatprep.subr.bf16.mxu0 0
    %371 = vmatpush2.bf16.msra.mxu0 %v337
    %372 = vmatprep.subr.bf16.mxu0 0
    %373 = vmatpush2.bf16.msra.mxu0 %v336
    %374 = vmatprep.subr.bf16.mxu0 0
    %375 = vmatpush2.bf16.msra.mxu0 %v335
    %376 = vmatprep.subr.bf16.mxu0 0
    %377 = vmatpush2.bf16.msra.mxu0 %v334
    %378 = vmatprep.subr.bf16.mxu0 0
    %379 = vmatpush2.bf16.msra.mxu0 %v333
    %380 = vmatprep.subr.bf16.mxu0 0
    %381 = vmatpush2.bf16.msra.mxu0 %v332
    %382 = vmatprep.subr.bf16.mxu0 0
    %383 = vmatpush2.bf16.msra.mxu0 %v331
    %384 = vmatprep.subr.bf16.mxu0 0
    %385 = vmatpush2.bf16.msra.mxu0 %v330
    %386 = vmatprep.mubr.bf16.mxu0 %v207
    %387 = vmatmul.mubr.bf16.gmra.mxu0 %v206
    %v388 = vpop.f32.mrf.mxu0
    %v389 = vadd.f32 %v126, %v388
    %v390 = vpop.f32.mrf.mxu0
    %v391 = vpop.f32.mrf.mxu0
    %v392 = vadd.f32 %v126, %v391
    %v393 = vpop.f32.mrf.mxu0
    %394 = vmatprep.mubr.bf16.mxu0 %v209
    %395 = vmatmul.mubr.bf16.gmra.mxu0 %v208
    %v396 = vpop.f32.mrf.mxu0
    %v397 = vadd.f32 %v126, %v396
    %v398 = vpop.f32.mrf.mxu0
    %v399 = vpop.f32.mrf.mxu0
    %v400 = vadd.f32 %v126, %v399
    %v401 = vpop.f32.mrf.mxu0
    %402 = vmatprep.mubr.bf16.mxu0 %v211
    %403 = vmatmul.mubr.bf16.gmra.mxu0 %v210
    %v404 = vpop.f32.mrf.mxu0
    %v405 = vadd.f32 %v126, %v404
    %v406 = vpop.f32.mrf.mxu0
    %v407 = vpop.f32.mrf.mxu0
    %v408 = vadd.f32 %v126, %v407
    %v409 = vpop.f32.mrf.mxu0
    %410 = vmatprep.mubr.bf16.mxu0 %v213
    %411 = vmatmul.mubr.bf16.gmra.mxu0 %v212
    %v412 = vpop.f32.mrf.mxu0
    %v413 = vadd.f32 %v126, %v412
    %v414 = vpop.f32.mrf.mxu0
    %v415 = vpop.f32.mrf.mxu0
    %v416 = vadd.f32 %v126, %v415
    %v417 = vpop.f32.mrf.mxu0
    %418 = vmatprep.mubr.bf16.mxu0 %v215
    %419 = vmatmul.mubr.bf16.gmra.mxu0 %v214
    %v420 = vpop.f32.mrf.mxu0
    %v421 = vadd.f32 %v126, %v420
    %v422 = vpop.f32.mrf.mxu0
    %v423 = vpop.f32.mrf.mxu0
    %v424 = vadd.f32 %v126, %v423
    %v425 = vpop.f32.mrf.mxu0
    %426 = vmatprep.mubr.bf16.mxu0 %v217
    %427 = vmatmul.mubr.bf16.gmra.mxu0 %v216
    %v428 = vpop.f32.mrf.mxu0
    %v429 = vadd.f32 %v126, %v428
    %v430 = vpop.f32.mrf.mxu0
    %v431 = vpop.f32.mrf.mxu0
    %v432 = vadd.f32 %v126, %v431
    %v433 = vpop.f32.mrf.mxu0
    %434 = vmatprep.mubr.bf16.mxu0 %v219
    %435 = vmatmul.mubr.bf16.gmra.mxu0 %v218
    %v436 = vpop.f32.mrf.mxu0
    %v437 = vadd.f32 %v126, %v436
    %v438 = vpop.f32.mrf.mxu0
    %v439 = vpop.f32.mrf.mxu0
    %v440 = vadd.f32 %v126, %v439
    %v441 = vpop.f32.mrf.mxu0
    %442 = vmatprep.mubr.bf16.mxu0 %v221
    %443 = vmatmul.mubr.bf16.gmra.mxu0 %v220
    %v444 = vpop.f32.mrf.mxu0
    %v445 = vadd.f32 %v126, %v444
    %v446 = vpop.f32.mrf.mxu0
    %v447 = vpop.f32.mrf.mxu0
    %v448 = vadd.f32 %v126, %v447
    %v449 = vpop.f32.mrf.mxu0
    %450 = vmatprep.mubr.bf16.mxu0 %v223
    %451 = vmatmul.mubr.bf16.gmra.mxu0 %v222
    %v452 = vpop.f32.mrf.mxu0
    %v453 = vadd.f32 %v126, %v452
    %v454 = vpop.f32.mrf.mxu0
    %v455 = vpop.f32.mrf.mxu0
    %v456 = vadd.f32 %v126, %v455
    %v457 = vpop.f32.mrf.mxu0
    %458 = vmatprep.mubr.bf16.mxu0 %v225
    %459 = vmatmul.mubr.bf16.gmra.mxu0 %v224
    %v460 = vpop.f32.mrf.mxu0
    %v461 = vadd.f32 %v126, %v460
    %v462 = vpop.f32.mrf.mxu0
    %v463 = vpop.f32.mrf.mxu0
    %v464 = vadd.f32 %v126, %v463
    %v465 = vpop.f32.mrf.mxu0
    %466 = vmatprep.mubr.bf16.mxu0 %v227
    %467 = vmatmul.mubr.bf16.gmra.mxu0 %v226
    %v468 = vpop.f32.mrf.mxu0
    %v469 = vadd.f32 %v126, %v468
    %v470 = vpop.f32.mrf.mxu0
    %v471 = vpop.f32.mrf.mxu0
    %v472 = vadd.f32 %v126, %v471
    %v473 = vpop.f32.mrf.mxu0
    %474 = vmatprep.mubr.bf16.mxu0 %v229
    %475 = vmatmul.mubr.bf16.gmra.mxu0 %v228
    %v476 = vpop.f32.mrf.mxu0
    %v477 = vadd.f32 %v126, %v476
    %v478 = vpop.f32.mrf.mxu0
    %v479 = vpop.f32.mrf.mxu0
    %v480 = vadd.f32 %v126, %v479
    %v481 = vpop.f32.mrf.mxu0
    %482 = vmatprep.mubr.bf16.mxu0 %v231
    %483 = vmatmul.mubr.bf16.gmra.mxu0 %v230
    %v484 = vpop.f32.mrf.mxu0
    %v485 = vadd.f32 %v126, %v484
    %v486 = vpop.f32.mrf.mxu0
    %v487 = vpop.f32.mrf.mxu0
    %v488 = vadd.f32 %v126, %v487
    %v489 = vpop.f32.mrf.mxu0
    %490 = vdwg.mxu0
    %v491 = vmax.f32 %v389, 0.0
    %v492 = vmax.f32 %v392, 0.0
    %v493 = vmax.f32 %v397, 0.0
    %v494 = vmax.f32 %v400, 0.0
    %v495 = vmax.f32 %v405, 0.0
    %v496 = vmax.f32 %v408, 0.0
    %v497 = vmax.f32 %v413, 0.0
    %v498 = vmax.f32 %v416, 0.0
    %v499 = vmax.f32 %v421, 0.0
    %v500 = vmax.f32 %v424, 0.0
    %v501 = vmax.f32 %v429, 0.0
    %v502 = vmax.f32 %v432, 0.0
    %v503 = vmax.f32 %v437, 0.0
    %v504 = vmax.f32 %v440, 0.0
    %v505 = vmax.f32 %v445, 0.0
    %v506 = vmax.f32 %v448, 0.0
    %v507 = vmax.f32 %v453, 0.0
    %v508 = vmax.f32 %v456, 0.0
    %v509 = vmax.f32 %v461, 0.0
    %v510 = vmax.f32 %v464, 0.0
    %v511 = vmax.f32 %v469, 0.0
    %v512 = vmax.f32 %v472, 0.0
    %v513 = vmax.f32 %v477, 0.0
    %v514 = vmax.f32 %v480, 0.0
    %v515 = vmax.f32 %v485, 0.0
    %v516 = vmax.f32 %v488, 0.0
    %v517 = vpack.c.bf16 %v492, %v491
    %v518 = vpack.c.bf16 %v494, %v493
    %v519 = vpack.c.bf16 %v496, %v495
    %v520 = vpack.c.bf16 %v498, %v497
    %v521 = vpack.c.bf16 %v500, %v499
    %v522 = vpack.c.bf16 %v502, %v501
    %v523 = vpack.c.bf16 %v504, %v503
    %v524 = vpack.c.bf16 %v506, %v505
    %v525 = vpack.c.bf16 %v508, %v507
    %v526 = vpack.c.bf16 %v510, %v509
    %v527 = vpack.c.bf16 %v512, %v511
    %v528 = vpack.c.bf16 %v514, %v513
    %v529 = vpack.c.bf16 %v516, %v515
    %v530 = vld [vmem:[#allocation7] sm:$0xf]
    %v531 = vld [vmem:[#allocation7 + $0x4] sm:$0xf]
    %v532 = vld [vmem:[#allocation7 + $0x8] sm:$0xf]
    %v533 = vld [vmem:[#allocation7 + $0xc] sm:$0xf]
    %v534 = vld [vmem:[#allocation7 + $0x10] sm:$0xf]
    %v535 = vld [vmem:[#allocation7 + $0x14] sm:$0xf]
    %v536 = vld [vmem:[#allocation7 + $0x18] sm:$0xf]
    %v537 = vld [vmem:[#allocation7 + $0x1c] sm:$0xf]
    %v538 = vld [vmem:[#allocation7 + $0x20] sm:$0xf]
    %v539 = vld [vmem:[#allocation7 + $0x24] sm:$0xf]
    %v540 = vld [vmem:[#allocation7 + $0x28] sm:$0xf]
    %v541 = vld [vmem:[#allocation7 + $0x2c] sm:$0xf]
    %v542 = vld [vmem:[#allocation7 + $0x30] sm:$0xf]
    %v543 = vld [vmem:[#allocation7 + $0x34] sm:$0xf]
    %v544 = vld [vmem:[#allocation7 + $0x38] sm:$0xf]
    %v545 = vld [vmem:[#allocation7 + $0x3c] sm:$0xf]
    %v546 = vld [vmem:[%s4] sm:$0x1]
    %v548 = vlaneseq
    %v549 = vshrl.u32 %v548, 7
    %v550 = vsub.s32 0, %v549
    %v551 = vrot.slane %v546, %v550
    %v569 = vunpack.c.l.b16 %v530
    %v570 = vunpack.c.l.b16 %v531
    %v571 = vunpack.c.l.b16 %v532
    %v572 = vunpack.c.l.b16 %v533
    %v573 = vunpack.c.l.b16 %v534
    %v574 = vunpack.c.l.b16 %v535
    %v575 = vunpack.c.l.b16 %v536
    %v576 = vunpack.c.l.b16 %v537
    %v577 = vunpack.c.l.b16 %v538
    %v578 = vunpack.c.l.b16 %v539
    %v579 = vunpack.c.l.b16 %v540
    %v580 = vunpack.c.l.b16 %v541
    %v581 = vunpack.c.l.b16 %v542
    %v582 = vunpack.c.l.b16 %v543
    %v583 = vunpack.c.l.b16 %v544
    %v584 = vunpack.c.l.b16 %v545
    %v585 = vpack.c.b16 %v570, %v569
    %v586 = vpack.c.b16 %v572, %v571
    %v587 = vpack.c.b16 %v574, %v573
    %v588 = vpack.c.b16 %v576, %v575
    %v589 = vpack.c.b16 %v578, %v577
    %v590 = vpack.c.b16 %v580, %v579
    %v591 = vpack.c.b16 %v582, %v581
    %v592 = vpack.c.b16 %v584, %v583
    %601 = vmatprep.subr.bf16.mxu0 0
    %602 = vmatpush1.bf16.msra.mxu0 %v592
    %603 = vmatprep.subr.bf16.mxu0 0
    %604 = vmatpush1.bf16.msra.mxu0 %v591
    %605 = vmatprep.subr.bf16.mxu0 0
    %606 = vmatpush1.bf16.msra.mxu0 %v590
    %607 = vmatprep.subr.bf16.mxu0 0
    %608 = vmatpush1.bf16.msra.mxu0 %v589
    %609 = vmatprep.subr.bf16.mxu0 0
    %610 = vmatpush1.bf16.msra.mxu0 %v588
    %611 = vmatprep.subr.bf16.mxu0 0
    %612 = vmatpush1.bf16.msra.mxu0 %v587
    %613 = vmatprep.subr.bf16.mxu0 0
    %614 = vmatpush1.bf16.msra.mxu0 %v586
    %615 = vmatprep.subr.bf16.mxu0 0
    %616 = vmatpush1.bf16.msra.mxu0 %v585
    %617 = vmatprep.subr.bf16.mxu0 0
    %618 = vmatpush2.bf16.msra.mxu0 0
    %619 = vmatprep.subr.bf16.mxu0 0
    %620 = vmatpush2.bf16.msra.mxu0 0
    %621 = vmatprep.subr.bf16.mxu0 0
    %622 = vmatpush2.bf16.msra.mxu0 0
    %623 = vmatprep.subr.bf16.mxu0 0
    %624 = vmatpush2.bf16.msra.mxu0 0
    %625 = vmatprep.subr.bf16.mxu0 0
    %626 = vmatpush2.bf16.msra.mxu0 0
    %627 = vmatprep.subr.bf16.mxu0 0
    %628 = vmatpush2.bf16.msra.mxu0 0
    %629 = vmatprep.subr.bf16.mxu0 0
    %630 = vmatpush2.bf16.msra.mxu0 0
    %631 = vmatprep.subr.bf16.mxu0 0
    %632 = vmatpush2.bf16.msra.mxu0 0
    %633 = vmatprep.mubr.bf16.mxu0 0
    %634 = vmatmul.mubr.bf16.gmra.mxu0 %v517
    %v635 = vpop.f32.mrf.mxu0
    %v636 = vadd.f32 %v551, %v635
    %v637 = vpop.f32.mrf.mxu0
    %v638 = vpop.f32.mrf.mxu0
    %v639 = vadd.f32 %v551, %v638
    %v640 = vpop.f32.mrf.mxu0
    %641 = vmatprep.mubr.bf16.mxu0 0
    %642 = vmatmul.mubr.bf16.gmra.mxu0 %v518
    %v643 = vpop.f32.mrf.mxu0
    %v644 = vadd.f32 %v551, %v643
    %v645 = vpop.f32.mrf.mxu0
    %v646 = vpop.f32.mrf.mxu0
    %v647 = vadd.f32 %v551, %v646
    %v648 = vpop.f32.mrf.mxu0
    %649 = vmatprep.mubr.bf16.mxu0 0
    %650 = vmatmul.mubr.bf16.gmra.mxu0 %v519
    %v651 = vpop.f32.mrf.mxu0
    %v652 = vadd.f32 %v551, %v651
    %v653 = vpop.f32.mrf.mxu0
    %v654 = vpop.f32.mrf.mxu0
    %v655 = vadd.f32 %v551, %v654
    %v656 = vpop.f32.mrf.mxu0
    %657 = vmatprep.mubr.bf16.mxu0 0
    %658 = vmatmul.mubr.bf16.gmra.mxu0 %v520
    %v659 = vpop.f32.mrf.mxu0
    %v660 = vadd.f32 %v551, %v659
    %v661 = vpop.f32.mrf.mxu0
    %v662 = vpop.f32.mrf.mxu0
    %v663 = vadd.f32 %v551, %v662
    %v664 = vpop.f32.mrf.mxu0
    %665 = vmatprep.mubr.bf16.mxu0 0
    %666 = vmatmul.mubr.bf16.gmra.mxu0 %v521
    %v667 = vpop.f32.mrf.mxu0
    %v668 = vadd.f32 %v551, %v667
    %v669 = vpop.f32.mrf.mxu0
    %v670 = vpop.f32.mrf.mxu0
    %v671 = vadd.f32 %v551, %v670
    %v672 = vpop.f32.mrf.mxu0
    %673 = vmatprep.mubr.bf16.mxu0 0
    %674 = vmatmul.mubr.bf16.gmra.mxu0 %v522
    %v675 = vpop.f32.mrf.mxu0
    %v676 = vadd.f32 %v551, %v675
    %v677 = vpop.f32.mrf.mxu0
    %v678 = vpop.f32.mrf.mxu0
    %v679 = vadd.f32 %v551, %v678
    %v680 = vpop.f32.mrf.mxu0
    %681 = vmatprep.mubr.bf16.mxu0 0
    %682 = vmatmul.mubr.bf16.gmra.mxu0 %v523
    %v683 = vpop.f32.mrf.mxu0
    %v684 = vadd.f32 %v551, %v683
    %v685 = vpop.f32.mrf.mxu0
    %v686 = vpop.f32.mrf.mxu0
    %v687 = vadd.f32 %v551, %v686
    %v688 = vpop.f32.mrf.mxu0
    %689 = vmatprep.mubr.bf16.mxu0 0
    %690 = vmatmul.mubr.bf16.gmra.mxu0 %v524
    %v691 = vpop.f32.mrf.mxu0
    %v692 = vadd.f32 %v551, %v691
    %v693 = vpop.f32.mrf.mxu0
    %v694 = vpop.f32.mrf.mxu0
    %v695 = vadd.f32 %v551, %v694
    %v696 = vpop.f32.mrf.mxu0
    %697 = vmatprep.mubr.bf16.mxu0 0
    %698 = vmatmul.mubr.bf16.gmra.mxu0 %v525
    %v699 = vpop.f32.mrf.mxu0
    %v700 = vadd.f32 %v551, %v699
    %v701 = vpop.f32.mrf.mxu0
    %v702 = vpop.f32.mrf.mxu0
    %v703 = vadd.f32 %v551, %v702
    %v704 = vpop.f32.mrf.mxu0
    %705 = vmatprep.mubr.bf16.mxu0 0
    %706 = vmatmul.mubr.bf16.gmra.mxu0 %v526
    %v707 = vpop.f32.mrf.mxu0
    %v708 = vadd.f32 %v551, %v707
    %v709 = vpop.f32.mrf.mxu0
    %v710 = vpop.f32.mrf.mxu0
    %v711 = vadd.f32 %v551, %v710
    %v712 = vpop.f32.mrf.mxu0
    %713 = vmatprep.mubr.bf16.mxu0 0
    %714 = vmatmul.mubr.bf16.gmra.mxu0 %v527
    %v715 = vpop.f32.mrf.mxu0
    %v716 = vadd.f32 %v551, %v715
    %v717 = vpop.f32.mrf.mxu0
    %v718 = vpop.f32.mrf.mxu0
    %v719 = vadd.f32 %v551, %v718
    %v720 = vpop.f32.mrf.mxu0
    %721 = vmatprep.mubr.bf16.mxu0 0
    %722 = vmatmul.mubr.bf16.gmra.mxu0 %v528
    %v723 = vpop.f32.mrf.mxu0
    %v724 = vadd.f32 %v551, %v723
    %v725 = vpop.f32.mrf.mxu0
    %v726 = vpop.f32.mrf.mxu0
    %v727 = vadd.f32 %v551, %v726
    %v728 = vpop.f32.mrf.mxu0
    %729 = vmatprep.mubr.bf16.mxu0 0
    %730 = vmatmul.mubr.bf16.gmra.mxu0 %v529
    %v731 = vpop.f32.mrf.mxu0
    %v732 = vadd.f32 %v551, %v731
    %v733 = vpop.f32.mrf.mxu0
    %v734 = vpop.f32.mrf.mxu0
    %v735 = vadd.f32 %v551, %v734
    %v736 = vpop.f32.mrf.mxu0
    %737 = vdwg.mxu0
    %v738 = vmax.f32 %v636, 0.0
    %v739 = vmax.f32 %v639, 0.0
    %v740 = vmax.f32 %v644, 0.0
    %v741 = vmax.f32 %v647, 0.0
    %v742 = vmax.f32 %v652, 0.0
    %v743 = vmax.f32 %v655, 0.0
    %v744 = vmax.f32 %v660, 0.0
    %v745 = vmax.f32 %v663, 0.0
    %v746 = vmax.f32 %v668, 0.0
    %v747 = vmax.f32 %v671, 0.0
    %v748 = vmax.f32 %v676, 0.0
    %v749 = vmax.f32 %v679, 0.0
    %v750 = vmax.f32 %v684, 0.0
    %v751 = vmax.f32 %v687, 0.0
    %v752 = vmax.f32 %v692, 0.0
    %v753 = vmax.f32 %v695, 0.0
    %v754 = vmax.f32 %v700, 0.0
    %v755 = vmax.f32 %v703, 0.0
    %v756 = vmax.f32 %v708, 0.0
    %v757 = vmax.f32 %v711, 0.0
    %v758 = vmax.f32 %v716, 0.0
    %v759 = vmax.f32 %v719, 0.0
    %v760 = vmax.f32 %v724, 0.0
    %v761 = vmax.f32 %v727, 0.0
    %v762 = vmax.f32 %v732, 0.0
    %v763 = vmax.f32 %v735, 0.0
    %764 = vst [vmem:[#allocation8] sm:$0xff] %v738
    %765 = vst [vmem:[#allocation8 + $0x8] sm:$0xff] %v739
    %766 = vst [vmem:[#allocation8 + $0x10] sm:$0xff] %v740
    %767 = vst [vmem:[#allocation8 + $0x18] sm:$0xff] %v741
    %768 = vst [vmem:[#allocation8 + $0x20] sm:$0xff] %v742
    %769 = vst [vmem:[#allocation8 + $0x28] sm:$0xff] %v743
    %770 = vst [vmem:[#allocation8 + $0x30] sm:$0xff] %v744
    %771 = vst [vmem:[#allocation8 + $0x38] sm:$0xff] %v745
    %772 = vst [vmem:[#allocation8 + $0x40] sm:$0xff] %v746
    %773 = vst [vmem:[#allocation8 + $0x48] sm:$0xff] %v747
    %774 = vst [vmem:[#allocation8 + $0x50] sm:$0xff] %v748
    %775 = vst [vmem:[#allocation8 + $0x58] sm:$0xff] %v749
    %776 = vst [vmem:[#allocation8 + $0x60] sm:$0xff] %v750
    %777 = vst [vmem:[#allocation8 + $0x68] sm:$0xff] %v751
    %778 = vst [vmem:[#allocation8 + $0x70] sm:$0xff] %v752
    %779 = vst [vmem:[#allocation8 + $0x78] sm:$0xff] %v753
    %780 = vst [vmem:[#allocation8 + $0x80] sm:$0xff] %v754
    %781 = vst [vmem:[#allocation8 + $0x88] sm:$0xff] %v755
    %782 = vst [vmem:[#allocation8 + $0x90] sm:$0xff] %v756
    %783 = vst [vmem:[#allocation8 + $0x98] sm:$0xff] %v757
    %784 = vst [vmem:[#allocation8 + $0xa0] sm:$0xff] %v758
    %785 = vst [vmem:[#allocation8 + $0xa8] sm:$0xff] %v759
    %786 = vst [vmem:[#allocation8 + $0xb0] sm:$0xff] %v760
    %787 = vst [vmem:[#allocation8 + $0xb8] sm:$0xff] %v761
    %788 = vst [vmem:[#allocation8 + $0xc0] sm:$0xff] %v762
    %789 = vst [vmem:[#allocation8 + $0xc8] sm:$0xff] %v763
    // Predicated region
    $region34: #{tpu_custom_call.1} parent=1 // pred_check
      _
    $region35: #{tpu_custom_call.1} parent=1 // pred_check_branch
      %791 = sbr.rel (0) target = $region37
    $region36: #{tpu_custom_call.1} parent=1 // pred_region
      %s793 = ssub.s32 3328, 3328
      %794 = vsyncadd [#allocation4], %s793
      %s795 = sshll.u32 [#allocation8], 4
      %s796 = int_to_ptr.vmem [resolvable:$true] %s795
      %801 = dma.vmem_to_hbm [thread:$0]  %s796, 3328, %s5, [#allocation4], 128, 128, 8
    $region37: #{tpu_custom_call.1} parent=1 // pred_fallthru
      _
    // Predicated region
    $region38: #{tpu_custom_call.1} parent=1 // pred_check
      _
    $region39: #{tpu_custom_call.1} parent=1 // pred_check_branch
      %803 = sbr.rel (0) target = $region41
    $region40: #{tpu_custom_call.1} parent=1 // pred_region
      %804 = dma.done [#allocation4], 3328
    $region41: #{tpu_custom_call.1} parent=1 // pred_fallthru
      _
    %805 = vsyncpa [#allocation3], 1
    %806 = vsyncpa [#allocation6], 1
    %807 = vsyncpa [#allocation4], 1

</llo_original>
